<compile_context>
chip_gen: v6e
topology: v6e:2x2x1
jax: 0.10.0
libtpu: 0.0.40
codegen_flags: <defaults>
</compile_context>

<pallas_src>
import jax
import jax.numpy as jnp
from jax.experimental import pallas as pl
from jax.experimental.pallas import tpu as pltpu


class Equation:
    """Base class for a PDE. Stateless (mirrors the torch nn.Module)."""

    def step(self, *args, **kwargs):
        """Performs one numerical step in time."""
        return self.forward(*args, **kwargs)

    def forward(self, *args, **kwargs):
        """Performs one numerical step in time."""
        # Abstract in the reference module (raises NotImplementedError);
        # no compute to translate here.
        raise NotImplementedError


# ----------------------------- Pallas kernel --------------------------------

_TARGET_ROWS = 512   # 512 x 1024 f32 = 2 MiB/ref; 3 refs x 2 buffers = 12 MiB
_MAX_LANES = 1024    # lane-axis width cap (multiple of 128)


def _min_rows(itemsize: int) -> int:
    # Packed-sublane minimum tile heights: f32 -> 8, bf16 -> 16, int8/fp8 -> 32.
    return {4: 8, 2: 16, 1: 32}.get(itemsize, 8)


def _choose_lanes(n: int):
    """Largest multiple-of-128 lane width (<= _MAX_LANES) that divides n.
    Falls back to L=128 with a minimal (<128 element) pad otherwise."""
    L = _MAX_LANES
    while L >= 128:
        if n % L == 0:
            return L, 0
        L -= 128
    return 128, (-n) % 128


def _choose_rows(R: int, min_rows: int) -> int:
    """Rows per tile: big enough to amortize per-step overhead, small enough to
    fit every generation's scoped VMEM, and splittable across 2 TCs on v7x."""
    if R < 2 * min_rows:
        return R  # single full-dim block (allowed even if not a multiple of 8)
    half = pl.cdiv(R, 2)
    return min(_TARGET_ROWS, min_rows * pl.cdiv(half, min_rows))


def _euler_kernel(dt_ref, u_ref, rhs_ref, out_ref):
    dt = dt_ref[0, 0]  # scalar read from SMEM, hoisted once per tile
    out_ref[...] = (u_ref[...].astype(jnp.float32)
                    + dt * rhs_ref[...].astype(jnp.float32)).astype(out_ref.dtype)


def _euler_step(u: jax.Array, rhs: jax.Array, dt) -> jax.Array:
    """Elementwise u + dt*rhs over an arbitrary-shaped array, tiled on TPU."""
    orig_shape = u.shape
    dtype = u.dtype
    n = u.size
    itemsize = jnp.dtype(dtype).itemsize

    L, pad = _choose_lanes(n)
    u_flat = u.reshape(-1)
    rhs_flat = rhs.reshape(-1)
    if pad:
        # TODO(synk): fallback for n % 128 != 0 costs two extra HBM passes
        # (pad + final slice); typical PDE grid sizes divide 128 and skip this.
        u_flat = jnp.pad(u_flat, (0, pad))
        rhs_flat = jnp.pad(rhs_flat, (0, pad))
    R = (n + pad) // L
    TR = _choose_rows(R, _min_rows(itemsize))

    u2d = u_flat.reshape(R, L)        # free reshape when pad == 0
    rhs2d = rhs_flat.reshape(R, L)
    # dt as an SMEM scalar: no recompile per timestep, jit-traceable.
    dt_arr = jnp.asarray(dt, dtype=jnp.float32).reshape(1, 1)

    out2d = pl.pallas_call(
        _euler_kernel,
        out_shape=jax.ShapeDtypeStruct((R, L), dtype),
        grid_spec=pl.GridSpec(
            grid=(pl.cdiv(R, TR),),                 # ragged last block is fine
            in_specs=[
                pl.BlockSpec(memory_space=pltpu.MemorySpace.SMEM),  # dt (1,1)
                pl.BlockSpec((TR, L), lambda i: (i, 0)),            # u
                pl.BlockSpec((TR, L), lambda i: (i, 0)),            # rhs
            ],
            out_specs=pl.BlockSpec((TR, L), lambda i: (i, 0)),
        ),
        compiler_params=pltpu.CompilerParams(
            dimension_semantics=("parallel",),      # 2 TCs on v7x when grid>=2
        ),
        cost_estimate=pl.CostEstimate(
            flops=2 * n, transcendentals=0,
            bytes_accessed=3 * n * itemsize + 4),
    )(dt_arr, u2d, rhs2d)

    if pad:
        return out2d.reshape(-1)[:n].reshape(orig_shape)
    return out2d.reshape(orig_shape)


class EulerEquation(Equation):
    """Minimal concrete Equation: one explicit-Euler step u_next = u + dt*rhs."""

    # TODO(synk): in a real solver, fuse this update into the kernel that
    # produces `rhs` — a standalone elementwise pass is purely HBM-bound
    # (read u + rhs, write u_next = 3n words minimum).
    def forward(self, u: jax.Array, rhs: jax.Array, dt=0.1) -> jax.Array:
        assert u.shape == rhs.shape
        return _euler_step(u, rhs, dt)


# --------------------------------- main --------------------------------------

if __name__ == "__main__":
    key = jax.random.PRNGKey(0)
    k_u, k_r = jax.random.split(key)
    B, C, H, W = 2, 4, 16, 16
    u = jax.random.normal(k_u, (B, C, H, W), dtype=jnp.float32)
    rhs = jax.random.normal(k_r, (B, C, H, W), dtype=jnp.float32)
    dt = 0.1

    ref = u + dt * rhs

    eq = EulerEquation()
    out = jax.block_until_ready(eq.step(u, rhs, dt))   # step() -> forward()
    assert out.shape == (B, C, H, W)
    assert out.dtype == u.dtype
    assert jnp.allclose(out, ref, atol=1e-6), "mismatch vs reference"

    # Multi-tile path (n = 131072 -> R=128, TR=64, grid=2: exercises both TCs).
    u2 = jax.random.normal(k_u, (4, 8, 64, 64), dtype=jnp.float32)
    rhs2 = jax.random.normal(k_r, (4, 8, 64, 64), dtype=jnp.float32)
    out2 = jax.block_until_ready(eq.step(u2, rhs2, 0.25))
    assert jnp.allclose(out2, u2 + 0.25 * rhs2, atol=1e-6)

    # Ragged fallback path (n % 128 != 0) still matches the reference.
    u3 = jax.random.normal(k_u, (3, 5, 7, 11), dtype=jnp.float32)
    rhs3 = jax.random.normal(k_r, (3, 5, 7, 11), dtype=jnp.float32)
    out3 = jax.block_until_ready(eq.step(u3, rhs3, 0.5))
    assert jnp.allclose(out3, u3 + 0.5 * rhs3, atol=1e-6)

    # dt as a traced value under jit: no ConcretizationError, no per-dt recompile.
    stepped = jax.jit(lambda a, b, d: eq.step(a, b, d))(u, rhs, jnp.float32(0.05))
    assert jnp.allclose(jax.block_until_ready(stepped), u + 0.05 * rhs, atol=1e-6)

    # Base class path: forward is abstract, as in the PyTorch module.
    try:
        Equation().step(u)
        raise AssertionError("base Equation.forward should raise")
    except NotImplementedError:
        pass

    print("KERNEL_OK")
</pallas_src>

<mosaic_0001>
module attributes {stable_mosaic.version = 11 : i64} {
  func.func @_euler_kernel(%arg0: i32, %arg1: memref<1x1xf32, #tpu.memory_space<smem>>, %arg2: memref<2x1024xf32, #tpu.memory_space<vmem>>, %arg3: memref<2x1024xf32, #tpu.memory_space<vmem>>, %arg4: memref<2x1024xf32, #tpu.memory_space<vmem>>) attributes {dimension_semantics = [#tpu.dimension_semantics<parallel>], iteration_bounds = array<i64: 1>, scalar_prefetch = 0 : i64, scratch_operands = 0 : i64, tpu.core_type = #tpu.core_type<tc>, window_params = [{transform_indices = @transform_0, window_bounds = array<i64: 1, 1>}, {transform_indices = @transform_1, window_bounds = array<i64: 2, 1024>}, {transform_indices = @transform_2, window_bounds = array<i64: 2, 1024>}, {transform_indices = @transform_3, window_bounds = array<i64: 2, 1024>}]} {
    %c0 = arith.constant 0 : index
    %c0_0 = arith.constant 0 : index
    %0 = memref.load %arg1[%c0, %c0_0] : memref<1x1xf32, #tpu.memory_space<smem>>
    %c0_1 = arith.constant 0 : index
    %c0_2 = arith.constant 0 : index
    %1 = vector.load %arg2[%c0_1, %c0_2] : memref<2x1024xf32, #tpu.memory_space<vmem>>, vector<2x1024xf32>
    %c0_3 = arith.constant 0 : index
    %c0_4 = arith.constant 0 : index
    %2 = vector.load %arg3[%c0_3, %c0_4] : memref<2x1024xf32, #tpu.memory_space<vmem>>, vector<2x1024xf32>
    %3 = vector.broadcast %0 : f32 to vector<2x1024xf32>
    %4 = arith.mulf %3, %2 : vector<2x1024xf32>
    %5 = arith.addf %1, %4 : vector<2x1024xf32>
    %c0_5 = arith.constant 0 : index
    %c0_6 = arith.constant 0 : index
    %6 = vector.load %arg4[%c0_5, %c0_6] : memref<2x1024xf32, #tpu.memory_space<vmem>>, vector<2x1024xf32>
    tpu.vector_store %arg4[%c0_5, %c0_6], %5 {strides = array<i32>} : memref<2x1024xf32, #tpu.memory_space<vmem>>, vector<2x1024xf32>,
    return
  }
  func.func @transform_0(%arg0: i32) -> (i32, i32) {
    %c0_i32 = arith.constant 0 : i32
    %c0_i32_0 = arith.constant 0 : i32
    %c0_i32_1 = arith.constant 0 : i32
    return %c0_i32, %c0_i32_0 : i32, i32
  }
  func.func @transform_1(%arg0: i32) -> (i32, i32) {
    %c0_i32 = arith.constant 0 : i32
    %c0_i32_0 = arith.constant 0 : i32
    return %arg0, %c0_i32 : i32, i32
  }
  func.func @transform_2(%arg0: i32) -> (i32, i32) {
    %c0_i32 = arith.constant 0 : i32
    %c0_i32_0 = arith.constant 0 : i32
    return %arg0, %c0_i32 : i32, i32
  }
  func.func @transform_3(%arg0: i32) -> (i32, i32) {
    %c0_i32 = arith.constant 0 : i32
    %c0_i32_0 = arith.constant 0 : i32
    return %arg0, %c0_i32 : i32, i32
  }
}

</mosaic_0001>

<llo_original>
// kernel: tpu_custom_call.1
$region0: #{tpu_custom_call.1}
  #allocation0 [shape = 'u32[]', space=smem, size = 0x4, offset = 0x4, fixed_abs, tag = 'smem constant byte address 0x4 - core index']
  #allocation1 [shape = 'u32[144,128]{1,0:T(1,128)}', space=vmem, size = 0x12000, scoped, tag = 'internal scratch']
  #allocation2 [shape = 'f32[1,1]{1,0:T(1,128)S(6)}', space=smem, size = 0x200, scoped, tag = 'scoped memory for tpu_custom_call.1']
  %s0 = inlined_call_operand.<no memory space> [shape: f32[1,1], index: 0, kind: input, shape index: {}]
  %s1 = inlined_call_operand.hbm [shape: f32[2,1024], index: 1, kind: input, shape index: {}]
  %s2 = inlined_call_operand.hbm [shape: f32[2,1024], index: 2, kind: input, shape index: {}]
  %s3 = inlined_call_operand.hbm [shape: f32[2,1024], index: 3, kind: output, shape index: {}]
  %s4 = sld [smem:[#allocation0]]
  $region30: #{tpu_custom_call.1} parent=0
    _
  %s6 = ssub.s32 1, %s4
  %s7 = scalar_select 0, %s6, %s4
  %8 = sst [smem:[#allocation2]] %s0
  $region1: #{tpu_custom_call.1} parent=0
    #allocation3 [shape = 'u8[8192]{0}', space=vmem, size = 0x2000, scoped, tag = 'input window, operand 1, single buffered']
    #allocation4 [shape = 's32[1]{0}', space=sflag, size = 0x4, scoped, tag = 'scoped memory for tpu_custom_call.1']
    #allocation5 [shape = 's32[1]{0}', space=sflag, size = 0x4, scoped, tag = 'scoped memory for tpu_custom_call.1']
    #allocation6 [shape = 'u8[8192]{0}', space=vmem, size = 0x2000, scoped, tag = 'input window, operand 2, single buffered']
    #allocation7 [shape = 's32[1]{0}', space=sflag, size = 0x4, scoped, tag = 'scoped memory for tpu_custom_call.1']
    #allocation8 [shape = 'u8[8192]{0}', space=vmem, size = 0x2000, scoped, tag = 'output window, operand 0, single buffered']
    %9 = vsyncpa [#allocation4], 0
    %10 = vsyncpa [#allocation7], 0
    %11 = vsyncpa [#allocation5], 0
    // Predicated region
    $region2: #{tpu_custom_call.1} parent=1 // pred_check
      _
    $region3: #{tpu_custom_call.1} parent=1 // pred_check_branch
      %13 = sbr.rel (0) target = $region5
    $region4: #{tpu_custom_call.1} parent=1 // pred_region
      _
    $region5: #{tpu_custom_call.1} parent=1 // pred_fallthru
      _
    // Predicated region
    $region6: #{tpu_custom_call.1} parent=1 // pred_check
      _
    $region7: #{tpu_custom_call.1} parent=1 // pred_check_branch
      %15 = sbr.rel (0) target = $region9
    $region8: #{tpu_custom_call.1} parent=1 // pred_region
      %s17 = ssub.s32 256, 256
      %18 = vsyncadd [#allocation4], %s17
      %s20 = sshll.u32 [#allocation3], 4
      %s21 = int_to_ptr.vmem [resolvable:$true] %s20
      %23 = dma.hbm_to_vmem [thread:$0]  %s1, 256, %s21, [#allocation4]
    $region9: #{tpu_custom_call.1} parent=1 // pred_fallthru
      _
    // Predicated region
    $region10: #{tpu_custom_call.1} parent=1 // pred_check
      _
    $region11: #{tpu_custom_call.1} parent=1 // pred_check_branch
      %25 = sbr.rel (0) target = $region13
    $region12: #{tpu_custom_call.1} parent=1 // pred_region
      %s27 = ssub.s32 256, 256
      %28 = vsyncadd [#allocation7], %s27
      %s30 = sshll.u32 [#allocation6], 4
      %s31 = int_to_ptr.vmem [resolvable:$true] %s30
      %33 = dma.hbm_to_vmem [thread:$0]  %s2, 256, %s31, [#allocation7]
    $region13: #{tpu_custom_call.1} parent=1 // pred_fallthru
      _
    // Predicated region
    $region14: #{tpu_custom_call.1} parent=1 // pred_check
      _
    $region15: #{tpu_custom_call.1} parent=1 // pred_check_branch
      %35 = sbr.rel (0) target = $region17
    $region16: #{tpu_custom_call.1} parent=1 // pred_region
      %36 = dma.done [#allocation4], 256
    $region17: #{tpu_custom_call.1} parent=1 // pred_fallthru
      _
    // Predicated region
    $region18: #{tpu_custom_call.1} parent=1 // pred_check
      _
    $region19: #{tpu_custom_call.1} parent=1 // pred_check_branch
      %38 = sbr.rel (0) target = $region21
    $region20: #{tpu_custom_call.1} parent=1 // pred_region
      %39 = dma.done [#allocation7], 256
    $region21: #{tpu_custom_call.1} parent=1 // pred_fallthru
      _
    %s40 = sld [smem:[#allocation2]]
    %v41 = vld [vmem:[#allocation3] sm:$0xff]
    %v42 = vld [vmem:[#allocation3 + $0x8] sm:$0xff]
    %v43 = vld [vmem:[#allocation6] sm:$0xff]
    %v44 = vld [vmem:[#allocation6 + $0x8] sm:$0xff]
    %v45 = vstv %s40
    %v46 = vmul.f32 %v45, %v43
    %v47 = vmul.f32 %v45, %v44
    %v48 = vadd.f32 %v41, %v46
    %v49 = vadd.f32 %v42, %v47
    %50 = vst [vmem:[#allocation8] sm:$0xff] %v48
    %51 = vst [vmem:[#allocation8 + $0x8] sm:$0xff] %v49
    // Predicated region
    $region22: #{tpu_custom_call.1} parent=1 // pred_check
      _
    $region23: #{tpu_custom_call.1} parent=1 // pred_check_branch
      %53 = sbr.rel (0) target = $region25
    $region24: #{tpu_custom_call.1} parent=1 // pred_region
      %s55 = ssub.s32 256, 256
      %56 = vsyncadd [#allocation5], %s55
      %s58 = sshll.u32 [#allocation8], 4
      %s59 = int_to_ptr.vmem [resolvable:$true] %s58
      %61 = dma.vmem_to_hbm [thread:$0]  %s59, 256, %s3, [#allocation5]
    $region25: #{tpu_custom_call.1} parent=1 // pred_fallthru
      _
    // Predicated region
    $region26: #{tpu_custom_call.1} parent=1 // pred_check
      _
    $region27: #{tpu_custom_call.1} parent=1 // pred_check_branch
      %63 = sbr.rel (0) target = $region29
    $region28: #{tpu_custom_call.1} parent=1 // pred_region
      %64 = dma.done [#allocation5], 256
    $region29: #{tpu_custom_call.1} parent=1 // pred_fallthru
      _
    %65 = vsyncpa [#allocation4], 1
    %66 = vsyncpa [#allocation7], 1
    %67 = vsyncpa [#allocation5], 1

</llo_original>
